<compile_context>
chip_gen: v6e
topology: v6e:2x2x1
jax: 0.10.0
libtpu: 0.0.40
codegen_flags: <defaults>
</compile_context>

<pallas_src>
import functools
import math

import jax
import jax.numpy as jnp
from jax import lax
from jax.experimental import pallas as pl
from jax.experimental.pallas import tpu as pltpu

_SQRT_HALF = 1.0 / math.sqrt(2.0)


def _round_up(x: int, m: int) -> int:
    return (x + m - 1) // m * m


def _domain_adapter_kernel(x_ref, w1_ref, vec_ref, w2_ref, o_ref,
                           *, d_out: int, approximate_gelu: bool):
    # Cast x on the VPU right before the MXU (hidden under the input DMA);
    # avoids a wrapper-side f32->bf16 HBM round-trip for x.
    x = x_ref[...].astype(jnp.bfloat16)

    # ---- Linear 1: bf16 operands, f32 MXU accumulation ----
    h = jnp.dot(x, w1_ref[...], preferred_element_type=jnp.float32)
    h = h + vec_ref[0:1, :]                              # b1

    # ---- LayerNorm (eps=1e-5) over the real d_out columns ----
    # Pad columns of h are exactly zero (zero-padded w1/b1), so plain sums
    # equal the sums over real columns: no iota/mask needed, and the two XLU
    # reductions can issue back-to-back.
    inv_d = 1.0 / float(d_out)
    mean = jnp.sum(h, axis=-1, keepdims=True) * inv_d
    ex2 = jnp.sum(h * h, axis=-1, keepdims=True) * inv_d
    var = ex2 - mean * mean
    inv = lax.rsqrt(var + 1e-5)                          # EUP slot
    h = (h - mean) * inv * vec_ref[1:2, :] + vec_ref[2:3, :]   # ln_w, ln_b
    # NOTE: zero pad ROWS (M padding) give var~0 here -> large-but-finite
    # garbage rows that are sliced off in the wrapper.  Intentional; do not
    # "fix" with a mask.

    # ---- GELU (exact erf matches torch nn.GELU default) ----
    if approximate_gelu:
        h = jax.nn.gelu(h, approximate=True)             # tanh -> EUP slot
    else:
        h = 0.5 * h * (1.0 + lax.erf(h * _SQRT_HALF))

    # ---- Linear 2 (attention_weights pre-folded into w2'/b2') ----
    out = jnp.dot(h.astype(jnp.bfloat16), w2_ref[...],
                  preferred_element_type=jnp.float32)
    o_ref[...] = (out + vec_ref[3:4, :]).astype(o_ref.dtype)   # b2'


def prepare_params(params):
    """Pad / cast / pack DomainAdapter parameters ONCE (not per forward call).

    - w1, w2 zero-padded to multiples of 128 and cast to bf16.
    - attention_weights folded into the second linear (column scale of w2,
      exact scale of b2) - mathematically identical to the post-multiply.
    - b1, ln_w, ln_b, b2' packed into one (8, D_out_p) f32 slab.
    """
    d_in, d_out = params["w1"].shape
    d_in_p, d_out_p = _round_up(d_in, 128), _round_up(d_out, 128)

    def pad2(a, rows, cols):
        return jnp.pad(a, ((0, rows - a.shape[0]), (0, cols - a.shape[1])))

    attn = params["attn"].reshape(1, d_out).astype(jnp.float32)
    w1 = pad2(params["w1"], d_in_p, d_out_p).astype(jnp.bfloat16)
    w2 = pad2(params["w2"] * attn, d_out_p, d_out_p).astype(jnp.bfloat16)
    vecs = jnp.concatenate(
        [params["b1"].reshape(1, d_out),
         params["ln_w"].reshape(1, d_out),
         params["ln_b"].reshape(1, d_out),
         params["b2"].reshape(1, d_out) * attn], axis=0).astype(jnp.float32)
    vecs = pad2(vecs, 8, d_out_p)
    return {"w1": w1, "w2": w2, "vecs": vecs,
            "d_in": d_in, "d_out": d_out,
            "d_in_p": d_in_p, "d_out_p": d_out_p}


def domain_adapter_forward(features, prepared, *, tm: int | None = None,
                           out_dtype=jnp.float32, approximate_gelu=False):
    """features: [B, S, D_in] float32 -> [B, S, D_out] (out_dtype)."""
    B, S, d_in = features.shape
    assert d_in == prepared["d_in"]
    d_out = prepared["d_out"]
    d_in_p, d_out_p = prepared["d_in_p"], prepared["d_out_p"]
    M = B * S

    # Row tile: big enough to amortize the ~0.35us per-step overhead, small
    # enough that the row grid has >=2 steps so ("parallel",) can shard work
    # across both v7x TensorCores.  Re-sweep per generation via `tm`.
    if tm is None:
        tm = 256
        if M < 2 * tm:
            tm = max(8, _round_up(pl.cdiv(M, 2), 8))
    m_p = _round_up(M, tm)

    x2d = features.reshape(M, d_in).astype(jnp.float32)
    if (m_p, d_in_p) != (M, d_in):
        x2d = jnp.pad(x2d, ((0, m_p - M), (0, d_in_p - d_in)))

    grid = (m_p // tm,)

    def resident(shape):
        # Grid-invariant operand: constant index_map keeps it in VMEM across
        # the whole grid; a single buffer halves its VMEM footprint.
        return pl.BlockSpec(shape, lambda i: (0, 0),
                            pipeline_mode=pl.Buffered(1))

    out_bytes = jnp.dtype(out_dtype).itemsize
    # VMEM budget: single-buffered residents + double-buffered x/out tiles
    # + f32 intermediates, ~30% headroom, clamped to the physical capacity of
    # the current generation (64 MiB per TC on v7x, 128 MiB on v5e/v6e).
    need = (prepared["w1"].size * 2 + prepared["w2"].size * 2
            + prepared["vecs"].size * 4
            + 2 * tm * d_in_p * 4
            + 2 * tm * d_out_p * out_bytes
            + 2 * tm * d_out_p * 4)
    vmem_limit = int(need * 1.3) + (2 << 20)
    try:
        cap = pltpu.get_tpu_info().vmem_capacity_bytes
    except Exception:
        cap = 64 * 1024 * 1024
    vmem_limit = max(16 * 1024 * 1024, min(vmem_limit, int(cap * 0.85)))
    # TODO(synk): for d_out_p >~ 2-3k the fully-resident w1/w2 no longer fit
    # v7x VMEM even single-buffered; add a K/N weight-tiling grid fallback.

    kernel = functools.partial(_domain_adapter_kernel, d_out=d_out,
                               approximate_gelu=approximate_gelu)

    out = pl.pallas_call(
        kernel,
        out_shape=jax.ShapeDtypeStruct((m_p, d_out_p), out_dtype),
        grid=grid,
        in_specs=[
            pl.BlockSpec((tm, d_in_p), lambda i: (i, 0)),   # x row tile (f32)
            resident((d_in_p, d_out_p)),                    # w1 (bf16)
            resident((8, d_out_p)),                         # packed b1/ln_w/ln_b/b2'
            resident((d_out_p, d_out_p)),                   # w2' (bf16, attn folded)
        ],
        out_specs=pl.BlockSpec((tm, d_out_p), lambda i: (i, 0)),
        compiler_params=pltpu.CompilerParams(
            dimension_semantics=("parallel",),              # rows across TCs (v7x)
            vmem_limit_bytes=vmem_limit,
        ),
        cost_estimate=pl.CostEstimate(
            flops=2 * m_p * (d_in_p * d_out_p + d_out_p * d_out_p),
            transcendentals=m_p * d_out_p,                  # erf/gelu (+ rsqrt)
            bytes_accessed=(x2d.size * 4
                            + prepared["w1"].size * 2
                            + prepared["w2"].size * 2
                            + prepared["vecs"].size * 4
                            + m_p * d_out_p * out_bytes),
        ),
    )(x2d, prepared["w1"], prepared["vecs"], prepared["w2"])

    return out[:M, :d_out].reshape(B, S, d_out)


def init_params(key, input_dim, output_dim):
    """Deterministic synthetic init mimicking the nn.Module parameter shapes.

    PyTorch stores Linear weights as [out, in]; here they are kept as
    [in, out] so the kernel does a plain x @ W (same math, transposed store).
    """
    k1, k2, k3, k4 = jax.random.split(key, 4)
    s1 = 1.0 / math.sqrt(input_dim)
    s2 = 1.0 / math.sqrt(output_dim)
    return {
        "w1": jax.random.uniform(k1, (input_dim, output_dim), jnp.float32, -s1, s1),
        "b1": jax.random.uniform(k2, (1, output_dim), jnp.float32, -s1, s1),
        "ln_w": jnp.ones((1, output_dim), jnp.float32),
        "ln_b": jnp.zeros((1, output_dim), jnp.float32),
        "w2": jax.random.uniform(k3, (output_dim, output_dim), jnp.float32, -s2, s2),
        "b2": jax.random.uniform(k4, (1, output_dim), jnp.float32, -s2, s2),
        # nn.Parameter(torch.ones(1, 1, output_dim)) -> all-ones, kept 2-D here
        "attn": jnp.ones((1, output_dim), jnp.float32),
    }


if __name__ == "__main__":
    key = jax.random.PRNGKey(0)
    B, S, D = 2, 8, 32          # small shapes: batch=2, seq=8, hidden=32
    kx, kp = jax.random.split(key)
    features = jax.random.normal(kx, (B, S, D), jnp.float32)
    params = init_params(kp, input_dim=D, output_dim=D)

    prepared = prepare_params(params)          # pad / cast / pack ONCE
    out = domain_adapter_forward(features, prepared)
    jax.block_until_ready(out)

    # Reference matching the kernel's precision policy: bf16 matmul operands,
    # f32 accumulation, f32 LayerNorm/GELU/bias math, attn folded into w2/b2
    # (identical to the torch post-multiply up to bf16 rounding; exact here
    # since attn == ones).
    def ref(x, p):
        attn = p["attn"]
        h = jnp.dot(x.astype(jnp.bfloat16), p["w1"].astype(jnp.bfloat16),
                    preferred_element_type=jnp.float32) + p["b1"]
        m = h.mean(-1, keepdims=True)
        v = ((h - m) ** 2).mean(-1, keepdims=True)
        h = (h - m) / jnp.sqrt(v + 1e-5) * p["ln_w"] + p["ln_b"]
        h = 0.5 * h * (1.0 + lax.erf(h / math.sqrt(2.0)))
        h = jnp.dot(h.astype(jnp.bfloat16),
                    (p["w2"] * attn).astype(jnp.bfloat16),
                    preferred_element_type=jnp.float32) + p["b2"] * attn
        return h

    expected = ref(features.reshape(B * S, D), params).reshape(B, S, D)
    assert jnp.allclose(out, expected, atol=1e-3, rtol=1e-3), (
        float(jnp.max(jnp.abs(out - expected))))

    print("KERNEL_OK")
</pallas_src>

<mosaic_0001>
module attributes {stable_mosaic.version = 11 : i64} {
  func.func @_domain_adapter_kernel(%arg0: i32, %arg1: memref<8x128xf32, #tpu.memory_space<vmem>>, %arg2: memref<128x128xbf16, #tpu.memory_space<vmem>>, %arg3: memref<8x128xf32, #tpu.memory_space<vmem>>, %arg4: memref<128x128xbf16, #tpu.memory_space<vmem>>, %arg5: memref<8x128xf32, #tpu.memory_space<vmem>>) attributes {dimension_semantics = [#tpu.dimension_semantics<parallel>], iteration_bounds = array<i64: 2>, scalar_prefetch = 0 : i64, scratch_operands = 0 : i64, tpu.core_type = #tpu.core_type<tc>, window_params = [{transform_indices = @transform_0, window_bounds = array<i64: 8, 128>}, {pipeline_mode = #tpu.pipeline_mode<synchronous>, transform_indices = @transform_1, window_bounds = array<i64: 128, 128>}, {pipeline_mode = #tpu.pipeline_mode<synchronous>, transform_indices = @transform_2, window_bounds = array<i64: 8, 128>}, {pipeline_mode = #tpu.pipeline_mode<synchronous>, transform_indices = @transform_3, window_bounds = array<i64: 128, 128>}, {transform_indices = @transform_4, window_bounds = array<i64: 8, 128>}]} {
    %c0 = arith.constant 0 : index
    %c0_0 = arith.constant 0 : index
    %0 = vector.load %arg1[%c0, %c0_0] : memref<8x128xf32, #tpu.memory_space<vmem>>, vector<8x128xf32>
    %1 = arith.truncf %0 : vector<8x128xf32> to vector<8x128xbf16>
    %c0_1 = arith.constant 0 : index
    %c0_2 = arith.constant 0 : index
    %2 = vector.load %arg2[%c0_1, %c0_2] : memref<128x128xbf16, #tpu.memory_space<vmem>>, vector<128x128xbf16>
    %cst = arith.constant dense<0.000000e+00> : vector<8x128xf32>
    %3 = tpu.matmul %1, %2, %cst {dimension_numbers = #tpu.dot_dimension_numbers<[1], [0], [0], [1], [0, 0, 1, 1], [], []>} : vector<8x128xbf16>, vector<128x128xbf16>, vector<8x128xf32> -> vector<8x128xf32>
    %c0_3 = arith.constant 0 : index
    %c0_4 = arith.constant 0 : index
    %4 = vector.load %arg3[%c0_3, %c0_4] : memref<8x128xf32, #tpu.memory_space<vmem>>, vector<1x128xf32>
    %5 = vector.broadcast %4 : vector<1x128xf32> to vector<8x128xf32>
    %6 = arith.addf %3, %5 : vector<8x128xf32>
    %cst_5 = arith.constant dense<0.000000e+00> : vector<8xf32>
    %7 = vector.multi_reduction <add>, %6, %cst_5 [1] : vector<8x128xf32> to vector<8xf32>
    %8 = vector.shape_cast %7 : vector<8xf32> to vector<8x1xf32>
    %cst_6 = arith.constant 3.125000e-02 : f32
    %9 = vector.broadcast %cst_6 : f32 to vector<8x1xf32>
    %10 = arith.mulf %8, %9 : vector<8x1xf32>
    %11 = arith.mulf %6, %6 : vector<8x128xf32>
    %cst_7 = arith.constant dense<0.000000e+00> : vector<8xf32>
    %12 = vector.multi_reduction <add>, %11, %cst_7 [1] : vector<8x128xf32> to vector<8xf32>
    %13 = vector.shape_cast %12 : vector<8xf32> to vector<8x1xf32>
    %cst_8 = arith.constant 3.125000e-02 : f32
    %14 = vector.broadcast %cst_8 : f32 to vector<8x1xf32>
    %15 = arith.mulf %13, %14 : vector<8x1xf32>
    %16 = arith.mulf %10, %10 : vector<8x1xf32>
    %17 = arith.subf %15, %16 : vector<8x1xf32>
    %cst_9 = arith.constant 9.99999974E-6 : f32
    %18 = vector.broadcast %cst_9 : f32 to vector<8x1xf32>
    %19 = arith.addf %17, %18 : vector<8x1xf32>
    %20 = math.rsqrt %19 : vector<8x1xf32>
    %21 = vector.broadcast %10 : vector<8x1xf32> to vector<8x128xf32>
    %22 = arith.subf %6, %21 : vector<8x128xf32>
    %23 = vector.broadcast %20 : vector<8x1xf32> to vector<8x128xf32>
    %24 = arith.mulf %22, %23 : vector<8x128xf32>
    %c1 = arith.constant 1 : index
    %c0_10 = arith.constant 0 : index
    %25 = vector.load %arg3[%c1, %c0_10] : memref<8x128xf32, #tpu.memory_space<vmem>>, vector<1x128xf32>
    %26 = vector.broadcast %25 : vector<1x128xf32> to vector<8x128xf32>
    %27 = arith.mulf %24, %26 : vector<8x128xf32>
    %c2 = arith.constant 2 : index
    %c0_11 = arith.constant 0 : index
    %28 = vector.load %arg3[%c2, %c0_11] : memref<8x128xf32, #tpu.memory_space<vmem>>, vector<1x128xf32>
    %29 = vector.broadcast %28 : vector<1x128xf32> to vector<8x128xf32>
    %30 = arith.addf %27, %29 : vector<8x128xf32>
    %cst_12 = arith.constant 5.000000e-01 : f32
    %31 = vector.broadcast %cst_12 : f32 to vector<8x128xf32>
    %32 = arith.mulf %31, %30 : vector<8x128xf32>
    %cst_13 = arith.constant 0.707106769 : f32
    %33 = vector.broadcast %cst_13 : f32 to vector<8x128xf32>
    %34 = arith.mulf %30, %33 : vector<8x128xf32>
    %35 = math.erf %34 : vector<8x128xf32>
    %cst_14 = arith.constant 1.000000e+00 : f32
    %36 = vector.broadcast %cst_14 : f32 to vector<8x128xf32>
    %37 = arith.addf %36, %35 : vector<8x128xf32>
    %38 = arith.mulf %32, %37 : vector<8x128xf32>
    %39 = arith.truncf %38 : vector<8x128xf32> to vector<8x128xbf16>
    %c0_15 = arith.constant 0 : index
    %c0_16 = arith.constant 0 : index
    %40 = vector.load %arg4[%c0_15, %c0_16] : memref<128x128xbf16, #tpu.memory_space<vmem>>, vector<128x128xbf16>
    %cst_17 = arith.constant dense<0.000000e+00> : vector<8x128xf32>
    %41 = tpu.matmul %39, %40, %cst_17 {dimension_numbers = #tpu.dot_dimension_numbers<[1], [0], [0], [1], [0, 0, 1, 1], [], []>} : vector<8x128xbf16>, vector<128x128xbf16>, vector<8x128xf32> -> vector<8x128xf32>
    %c3 = arith.constant 3 : index
    %c0_18 = arith.constant 0 : index
    %42 = vector.load %arg3[%c3, %c0_18] : memref<8x128xf32, #tpu.memory_space<vmem>>, vector<1x128xf32>
    %43 = vector.broadcast %42 : vector<1x128xf32> to vector<8x128xf32>
    %44 = arith.addf %41, %43 : vector<8x128xf32>
    %c0_19 = arith.constant 0 : index
    %c0_20 = arith.constant 0 : index
    %45 = vector.load %arg5[%c0_19, %c0_20] : memref<8x128xf32, #tpu.memory_space<vmem>>, vector<8x128xf32>
    tpu.vector_store %arg5[%c0_19, %c0_20], %44 {strides = array<i32>} : memref<8x128xf32, #tpu.memory_space<vmem>>, vector<8x128xf32>,
    return
  }
  func.func @transform_0(%arg0: i32) -> (i32, i32) {
    %c0_i32 = arith.constant 0 : i32
    %c0_i32_0 = arith.constant 0 : i32
    return %arg0, %c0_i32 : i32, i32
  }
  func.func @transform_1(%arg0: i32) -> (i32, i32) {
    %c0_i32 = arith.constant 0 : i32
    %c0_i32_0 = arith.constant 0 : i32
    %c0_i32_1 = arith.constant 0 : i32
    return %c0_i32, %c0_i32_0 : i32, i32
  }
  func.func @transform_2(%arg0: i32) -> (i32, i32) {
    %c0_i32 = arith.constant 0 : i32
    %c0_i32_0 = arith.constant 0 : i32
    %c0_i32_1 = arith.constant 0 : i32
    return %c0_i32, %c0_i32_0 : i32, i32
  }
  func.func @transform_3(%arg0: i32) -> (i32, i32) {
    %c0_i32 = arith.constant 0 : i32
    %c0_i32_0 = arith.constant 0 : i32
    %c0_i32_1 = arith.constant 0 : i32
    return %c0_i32, %c0_i32_0 : i32, i32
  }
  func.func @transform_4(%arg0: i32) -> (i32, i32) {
    %c0_i32 = arith.constant 0 : i32
    %c0_i32_0 = arith.constant 0 : i32
    return %arg0, %c0_i32 : i32, i32
  }
}

</mosaic_0001>

<llo_original>
// kernel: tpu_custom_call.1
$region0: #{tpu_custom_call.1}
  #allocation0 [shape = 'u32[]', space=smem, size = 0x4, offset = 0x4, fixed_abs, tag = 'smem constant byte address 0x4 - core index']
  #allocation1 [shape = 'u32[144,128]{1,0:T(1,128)}', space=vmem, size = 0x12000, scoped, tag = 'internal scratch']
  %s0 = inlined_call_operand.hbm [shape: f32[16,128], index: 0, kind: input, shape index: {}]
  %s1 = inlined_call_operand.hbm [shape: bf16[128,128], index: 1, kind: input, shape index: {}]
  %s2 = inlined_call_operand.hbm [shape: f32[8,128], index: 2, kind: input, shape index: {}]
  %s3 = inlined_call_operand.hbm [shape: bf16[128,128], index: 3, kind: input, shape index: {}]
  %s4 = inlined_call_operand.hbm [shape: f32[16,128], index: 4, kind: output, shape index: {}]
  %s5 = sld [smem:[#allocation0]]
  $region65: #{tpu_custom_call.1} parent=0
    _
  %s7 = ssub.s32 1, %s5
  %s8 = scalar_select 0, %s7, %s5
  $region1: #{tpu_custom_call.1} parent=0
    #allocation2 [shape = 'u8[8192]{0}', space=vmem, size = 0x2000, scoped, tag = 'input window, operand 0']
    #allocation3 [shape = 's32[2]{0}', space=sflag, size = 0x8, scoped, tag = 'scoped memory for tpu_custom_call.1']
    #allocation4 [shape = 's32[2]{0}', space=sflag, size = 0x8, scoped, tag = 'scoped memory for tpu_custom_call.1']
    #allocation5 [shape = 'u8[32768]{0}', space=vmem, size = 0x8000, scoped, tag = 'input window, operand 1, single buffered']
    #allocation6 [shape = 's32[1]{0}', space=sflag, size = 0x4, scoped, tag = 'scoped memory for tpu_custom_call.1']
    #allocation7 [shape = 'u8[4096]{0}', space=vmem, size = 0x1000, scoped, tag = 'input window, operand 2, single buffered']
    #allocation8 [shape = 'u8[32768]{0}', space=vmem, size = 0x8000, scoped, tag = 'input window, operand 3, single buffered']
    #allocation9 [shape = 's32[1]{0}', space=sflag, size = 0x4, scoped, tag = 'scoped memory for tpu_custom_call.1']
    #allocation10 [shape = 'u8[8192]{0}', space=vmem, size = 0x2000, scoped, tag = 'output window, operand 0']
    %9 = vsyncpa [#allocation3], 0
    %s10 = scalar_lea.sflag [#allocation3], 1
    %11 = vsyncpa %s10, 0
    %12 = vsyncpa [#allocation6], 0
    %13 = vsyncpa [#allocation9], 0
    %14 = vsyncpa [#allocation4], 0
    %s15 = scalar_lea.sflag [#allocation4], 1
    %16 = vsyncpa %s15, 0
    loop: start=0, step=1, limit=4
    $region2: #{tpu_custom_call.1} parent=1 // loop_pre_header
      _
    $region3: #{tpu_custom_call.1} parent=1 // loop_header
      %s18 = sphi 0, %s22
      %p19 = scmp.ge.s32.totalorder %s18, 4
      %s28 = sphi 0, %s30
      %s31 = sphi 0, %s28
      %s32 = sphi 0, %s31
      %s48 = sphi 0, %s32
      %s52 = sphi 0, %s52
      %s54 = sphi 0, %s52
      %s55 = sphi 0, %s54
      %s69 = sphi 0, %s55
      %s73 = sphi 0, %s73
      %s75 = sphi 0, %s73
      %s76 = sphi 0, %s75
      %s90 = sphi 0, %s76
      %s94 = sphi 0, %s94
      %s96 = sphi 0, %s94
      %s97 = sphi 0, %s96
      %s111 = sphi 0, %s97
      %s117 = sphi 0, %s119
      %s120 = sphi 0, %s117
      %s121 = sphi 0, %s120
      %s137 = sphi 0, %s121
    $region4: #{tpu_custom_call.1} parent=1 // loop_header_branch
      %21 = sbr.rel (%p19) target = $region8
    $region5: #{tpu_custom_call.1} parent=1 // loop_body
      %s23 = ssub.s32 %s18, 1
      %s24 = ssub.s32 %s18, 2
      %s25 = sadd.s32 %s18, 1
      %s26 = ssub.s32 %s18, %s25
      %p27 = scmp.eq.s32.totalorder %s26, 0
      %s29 = sadd.s32 %s28, 1
      %s30 = scalar_select %p27, %s28, %s29
      %p33 = pneg %p27
      %p34 = scmp.eq.s32.totalorder %s18, 1
      %p35 = por %p33, %p34
      %p36 = scmp.ne.s32.totalorder %s28, %s31
      %p37 = scmp.eq.s32.totalorder %s18, 0
      %p38 = por %p36, %p37
      %p39 = scmp.ne.s32.totalorder %s28, %s31
      %p40 = scmp.eq.s32.totalorder %s23, 1
      %p41 = por %p39, %p40
      %p42 = scmp.ne.s32.totalorder %s31, %s32
      %p43 = scmp.eq.s32.totalorder %s23, 0
      %p44 = por %p42, %p43
      %p45 = scmp.ne.s32.totalorder %s31, %s32
      %p46 = scmp.eq.s32.totalorder %s24, 1
      %p47 = por %p45, %p46
      %p49 = scmp.ne.s32.totalorder %s32, %s48
      %p50 = scmp.eq.s32.totalorder %s24, 0
      %p51 = por %p49, %p50
      %s53 = sadd.s32 %s52, 1
      %p56 = scmp.eq.s32.totalorder %s18, 1
      %p57 = scmp.ne.s32.totalorder %s52, %s54
      %p58 = scmp.eq.s32.totalorder %s18, 0
      %p59 = por %p57, %p58
      %p60 = scmp.ne.s32.totalorder %s52, %s54
      %p61 = scmp.eq.s32.totalorder %s23, 1
      %p62 = por %p60, %p61
      %p63 = scmp.ne.s32.totalorder %s54, %s55
      %p64 = scmp.eq.s32.totalorder %s23, 0
      %p65 = por %p63, %p64
      %p66 = scmp.ne.s32.totalorder %s54, %s55
      %p67 = scmp.eq.s32.totalorder %s24, 1
      %p68 = por %p66, %p67
      %p70 = scmp.ne.s32.totalorder %s55, %s69
      %p71 = scmp.eq.s32.totalorder %s24, 0
      %p72 = por %p70, %p71
      %s74 = sadd.s32 %s73, 1
      %p77 = scmp.eq.s32.totalorder %s18, 1
      %p78 = scmp.ne.s32.totalorder %s73, %s75
      %p79 = scmp.eq.s32.totalorder %s18, 0
      %p80 = por %p78, %p79
      %p81 = scmp.ne.s32.totalorder %s73, %s75
      %p82 = scmp.eq.s32.totalorder %s23, 1
      %p83 = por %p81, %p82
      %p84 = scmp.ne.s32.totalorder %s75, %s76
      %p85 = scmp.eq.s32.totalorder %s23, 0
      %p86 = por %p84, %p85
      %p87 = scmp.ne.s32.totalorder %s75, %s76
      %p88 = scmp.eq.s32.totalorder %s24, 1
      %p89 = por %p87, %p88
      %p91 = scmp.ne.s32.totalorder %s76, %s90
      %p92 = scmp.eq.s32.totalorder %s24, 0
      %p93 = por %p91, %p92
      %s95 = sadd.s32 %s94, 1
      %p98 = scmp.eq.s32.totalorder %s18, 1
      %p99 = scmp.ne.s32.totalorder %s94, %s96
      %p100 = scmp.eq.s32.totalorder %s18, 0
      %p101 = por %p99, %p100
      %p102 = scmp.ne.s32.totalorder %s94, %s96
      %p103 = scmp.eq.s32.totalorder %s23, 1
      %p104 = por %p102, %p103
      %p105 = scmp.ne.s32.totalorder %s96, %s97
      %p106 = scmp.eq.s32.totalorder %s23, 0
      %p107 = por %p105, %p106
      %p108 = scmp.ne.s32.totalorder %s96, %s97
      %p109 = scmp.eq.s32.totalorder %s24, 1
      %p110 = por %p108, %p109
      %p112 = scmp.ne.s32.totalorder %s97, %s111
      %p113 = scmp.eq.s32.totalorder %s24, 0
      %p114 = por %p112, %p113
      %s115 = ssub.s32 %s18, %s25
      %p116 = scmp.eq.s32.totalorder %s115, 0
      %s118 = sadd.s32 %s117, 1
      %s119 = scalar_select %p116, %s117, %s118
      %p122 = pneg %p116
      %p123 = scmp.eq.s32.totalorder %s18, 1
      %p124 = por %p122, %p123
      %p125 = scmp.ne.s32.totalorder %s117, %s120
      %p126 = scmp.eq.s32.totalorder %s18, 0
      %p127 = por %p125, %p126
      %p128 = scmp.ne.s32.totalorder %s117, %s120
      %p129 = scmp.eq.s32.totalorder %s23, 1
      %p130 = por %p128, %p129
      %p131 = scmp.ne.s32.totalorder %s120, %s121
      %p132 = scmp.eq.s32.totalorder %s23, 0
      %p133 = por %p131, %p132
      %p134 = scmp.ne.s32.totalorder %s120, %s121
      %p135 = scmp.eq.s32.totalorder %s24, 1
      %p136 = por %p134, %p135
      %p138 = scmp.ne.s32.totalorder %s121, %s137
      %p139 = scmp.eq.s32.totalorder %s24, 0
      %p140 = por %p138, %p139
      %p141 = scmp.le.s32.totalorder 1, %s18
      %p142 = scmp.lt.s32.totalorder %s18, 3
      %p143 = pnand %p141, %p142
      %p144 = pneg %p143
      // Predicated region
      $region9: #{tpu_custom_call.1} parent=5 // pred_check
        _
      $region10: #{tpu_custom_call.1} parent=5 // pred_check_branch
        %146 = sbr.rel (%p143) target = $region12
      $region11: #{tpu_custom_call.1} parent=5 // pred_region
        %s147 = ssub.s32 %s18, 1
        // Predicated region
        $region13: #{tpu_custom_call.1} parent=11 // pred_check
          %p148 = pneg %p65
        $region14: #{tpu_custom_call.1} parent=11 // pred_check_branch
          %150 = sbr.rel (%p148) target = $region16
        $region15: #{tpu_custom_call.1} parent=11 // pred_region
          %s152 = ssub.s32 1024, 1024
          %153 = vsyncadd [#allocation6], %s152
          %s154 = sshll.u32 [#allocation5], 4
          %s155 = int_to_ptr.vmem [resolvable:$true] %s154
          %160 = dma.hbm_to_vmem [thread:$0]  %s1, 1024, %s155, [#allocation6], 64, 64, 4
        $region16: #{tpu_custom_call.1} parent=11 // pred_fallthru
          _
        // Predicated region
        $region17: #{tpu_custom_call.1} parent=11 // pred_check
          %p161 = pneg %p86
        $region18: #{tpu_custom_call.1} parent=11 // pred_check_branch
          %163 = sbr.rel (%p161) target = $region20
        $region19: #{tpu_custom_call.1} parent=11 // pred_region
          %s165 = ssub.s32 128, 128
          %166 = vsyncadd [#allocation6], %s165
          %s168 = sshll.u32 [#allocation7], 4
          %s169 = int_to_ptr.vmem [resolvable:$true] %s168
          %171 = dma.hbm_to_vmem [thread:$0]  %s2, 128, %s169, [#allocation6]
        $region20: #{tpu_custom_call.1} parent=11 // pred_fallthru
          _
        // Predicated region
        $region21: #{tpu_custom_call.1} parent=11 // pred_check
          %p172 = pneg %p107
        $region22: #{tpu_custom_call.1} parent=11 // pred_check_branch
          %174 = sbr.rel (%p172) target = $region24
        $region23: #{tpu_custom_call.1} parent=11 // pred_region
          %s176 = ssub.s32 1024, 1024
          %177 = vsyncadd [#allocation9], %s176
          %s178 = sshll.u32 [#allocation8], 4
          %s179 = int_to_ptr.vmem [resolvable:$true] %s178
          %184 = dma.hbm_to_vmem [thread:$0]  %s3, 1024, %s179, [#allocation9], 64, 64, 4
        $region24: #{tpu_custom_call.1} parent=11 // pred_fallthru
          _
      $region12: #{tpu_custom_call.1} parent=5 // pred_fallthru
        _
      %p185 = scmp.lt.s32.totalorder %s18, 2
      // Predicated region
      $region25: #{tpu_custom_call.1} parent=5 // pred_check
        %p186 = pneg %p185
      $region26: #{tpu_custom_call.1} parent=5 // pred_check_branch
        %188 = sbr.rel (%p186) target = $region28
      $region27: #{tpu_custom_call.1} parent=5 // pred_region
        // Predicated region
        $region29: #{tpu_custom_call.1} parent=27 // pred_check
          %p189 = pneg %p38
        $region30: #{tpu_custom_call.1} parent=27 // pred_check_branch
          %191 = sbr.rel (%p189) target = $region32
        $region31: #{tpu_custom_call.1} parent=27 // pred_region
          %s192 = sand.u32 %s28, 1
          %s193 = scalar_lea.sflag [#allocation3], %s192
          %s194 = sand.u32 %s28, 1
          %s195 = smul.addr %s194, 8
          %s196 = scalar_lea.vmem [#allocation2], %s195
          %s198 = ssub.s32 128, 128
          %199 = vsyncadd %s193, %s198
          %s200 = smul.addr %s18, 128
          %s201 = scalar_lea.hbm %s0, %s200
          %s203 = sshll.u32 %s196, 4
          %s204 = int_to_ptr.vmem [resolvable:$true] %s203
          %206 = dma.hbm_to_vmem [thread:$0]  %s201, 128, %s204, %s193
        $region32: #{tpu_custom_call.1} parent=27 // pred_fallthru
          _
      $region28: #{tpu_custom_call.1} parent=5 // pred_fallthru
        _
      %p207 = scmp.le.s32.totalorder 1, %s18
      %p208 = scmp.lt.s32.totalorder %s18, 3
      %p209 = pnand %p207, %p208
      %p210 = pneg %p209
      // Predicated region
      $region33: #{tpu_custom_call.1} parent=5 // pred_check
        _
      $region34: #{tpu_custom_call.1} parent=5 // pred_check_branch
        %212 = sbr.rel (%p209) target = $region36
      $region35: #{tpu_custom_call.1} parent=5 // pred_region
        %s213 = ssub.s32 %s18, 1
        %s214 = sand.u32 %s31, 1
        %s215 = scalar_lea.sflag [#allocation3], %s214
        %s216 = sand.u32 %s31, 1
        %s217 = smul.addr %s216, 8
        %s218 = scalar_lea.vmem [#allocation2], %s217
        // Predicated region
        $region37: #{tpu_custom_call.1} parent=35 // pred_check
          %p219 = pneg %p44
        $region38: #{tpu_custom_call.1} parent=35 // pred_check_branch
          %221 = sbr.rel (%p219) target = $region40
        $region39: #{tpu_custom_call.1} parent=35 // pred_region
          %222 = dma.done %s215, 128
        $region40: #{tpu_custom_call.1} parent=35 // pred_fallthru
          _
        // Predicated region
        $region41: #{tpu_custom_call.1} parent=35 // pred_check
          %p223 = pneg %p65
        $region42: #{tpu_custom_call.1} parent=35 // pred_check_branch
          %225 = sbr.rel (%p223) target = $region44
        $region43: #{tpu_custom_call.1} parent=35 // pred_region
          %226 = dma.done [#allocation6], 1024
        $region44: #{tpu_custom_call.1} parent=35 // pred_fallthru
          _
        // Predicated region
        $region45: #{tpu_custom_call.1} parent=35 // pred_check
          %p227 = pneg %p86
        $region46: #{tpu_custom_call.1} parent=35 // pred_check_branch
          %229 = sbr.rel (%p227) target = $region48
        $region47: #{tpu_custom_call.1} parent=35 // pred_region
          %230 = dma.done [#allocation6], 128
        $region48: #{tpu_custom_call.1} parent=35 // pred_fallthru
          _
        // Predicated region
        $region49: #{tpu_custom_call.1} parent=35 // pred_check
          %p231 = pneg %p107
        $region50: #{tpu_custom_call.1} parent=35 // pred_check_branch
          %233 = sbr.rel (%p231) target = $region52
        $region51: #{tpu_custom_call.1} parent=35 // pred_region
          %234 = dma.done [#allocation9], 1024
        $region52: #{tpu_custom_call.1} parent=35 // pred_fallthru
          _
        %s235 = sand.u32 %s31, 1
        %s236 = scalar_lea.sflag [#allocation3], %s235
        %s237 = sand.u32 %s31, 1
        %s238 = smul.addr %s237, 8
        %s239 = scalar_lea.vmem [#allocation2], %s238
        %p240 = pneg %p44
        %p241 = pneg %p41
        %p242 = pneg %p65
        %p243 = pneg %p62
        %p244 = pneg %p86
        %p245 = pneg %p83
        %p246 = pneg %p107
        %p247 = pneg %p104
        %p248 = pneg %p133
        %p249 = pneg %p130
        %s250 = sand.u32 %s120, 1
        %s251 = scalar_lea.sflag [#allocation4], %s250
        %s252 = sand.u32 %s120, 1
        %s253 = smul.addr %s252, 8
        %s254 = scalar_lea.vmem [#allocation10], %s253
        %v256 = vld [vmem:[%s218] sm:$0xff]
        %v257 = vpack.c.bf16 %v256, %v256
        %v258 = vld [vmem:[#allocation5] sm:$0xf]
        %v259 = vld [vmem:[#allocation5 + $0x4] sm:$0xf]
        %v260 = vld [vmem:[#allocation5 + $0x8] sm:$0xf]
        %v261 = vld [vmem:[#allocation5 + $0xc] sm:$0xf]
        %v262 = vld [vmem:[#allocation5 + $0x10] sm:$0xf]
        %v263 = vld [vmem:[#allocation5 + $0x14] sm:$0xf]
        %v264 = vld [vmem:[#allocation5 + $0x18] sm:$0xf]
        %v265 = vld [vmem:[#allocation5 + $0x1c] sm:$0xf]
        %v266 = vld [vmem:[#allocation5 + $0x20] sm:$0xf]
        %v267 = vld [vmem:[#allocation5 + $0x24] sm:$0xf]
        %v268 = vld [vmem:[#allocation5 + $0x28] sm:$0xf]
        %v269 = vld [vmem:[#allocation5 + $0x2c] sm:$0xf]
        %v270 = vld [vmem:[#allocation5 + $0x30] sm:$0xf]
        %v271 = vld [vmem:[#allocation5 + $0x34] sm:$0xf]
        %v272 = vld [vmem:[#allocation5 + $0x38] sm:$0xf]
        %v273 = vld [vmem:[#allocation5 + $0x3c] sm:$0xf]
        %v274 = vld [vmem:[#allocation7] sm:$0x1]
        %v275 = vlaneseq
        %v276 = vshrl.u32 %v275, 7
        %v277 = vsub.s32 0, %v276
        %v278 = vrot.slane %v274, %v277
        %v295 = vunpack.c.l.b16 %v258
        %v296 = vunpack.c.l.b16 %v259
        %v297 = vunpack.c.l.b16 %v260
        %v298 = vunpack.c.l.b16 %v261
        %v299 = vunpack.c.l.b16 %v262
        %v300 = vunpack.c.l.b16 %v263
        %v301 = vunpack.c.l.b16 %v264
        %v302 = vunpack.c.l.b16 %v265
        %v303 = vunpack.c.l.b16 %v266
        %v304 = vunpack.c.l.b16 %v267
        %v305 = vunpack.c.l.b16 %v268
        %v306 = vunpack.c.l.b16 %v269
        %v307 = vunpack.c.l.b16 %v270
        %v308 = vunpack.c.l.b16 %v271
        %v309 = vunpack.c.l.b16 %v272
        %v310 = vunpack.c.l.b16 %v273
        %v311 = vpack.c.b16 %v296, %v295
        %v312 = vpack.c.b16 %v298, %v297
        %v313 = vpack.c.b16 %v300, %v299
        %v314 = vpack.c.b16 %v302, %v301
        %v315 = vpack.c.b16 %v304, %v303
        %v316 = vpack.c.b16 %v306, %v305
        %v317 = vpack.c.b16 %v308, %v307
        %v318 = vpack.c.b16 %v310, %v309
        %327 = vmatprep.subr.bf16.mxu0 0
        %328 = vmatpush1.bf16.msra.mxu0 %v318
        %329 = vmatprep.subr.bf16.mxu0 0
        %330 = vmatpush1.bf16.msra.mxu0 %v317
        %331 = vmatprep.subr.bf16.mxu0 0
        %332 = vmatpush1.bf16.msra.mxu0 %v316
        %333 = vmatprep.subr.bf16.mxu0 0
        %334 = vmatpush1.bf16.msra.mxu0 %v315
        %335 = vmatprep.subr.bf16.mxu0 0
        %336 = vmatpush1.bf16.msra.mxu0 %v314
        %337 = vmatprep.subr.bf16.mxu0 0
        %338 = vmatpush1.bf16.msra.mxu0 %v313
        %339 = vmatprep.subr.bf16.mxu0 0
        %340 = vmatpush1.bf16.msra.mxu0 %v312
        %341 = vmatprep.subr.bf16.mxu0 0
        %342 = vmatpush1.bf16.msra.mxu0 %v311
        %343 = vmatprep.subr.bf16.mxu0 0
        %344 = vmatpush2.bf16.msra.mxu0 0
        %345 = vmatprep.subr.bf16.mxu0 0
        %346 = vmatpush2.bf16.msra.mxu0 0
        %347 = vmatprep.subr.bf16.mxu0 0
        %348 = vmatpush2.bf16.msra.mxu0 0
        %349 = vmatprep.subr.bf16.mxu0 0
        %350 = vmatpush2.bf16.msra.mxu0 0
        %351 = vmatprep.subr.bf16.mxu0 0
        %352 = vmatpush2.bf16.msra.mxu0 0
        %353 = vmatprep.subr.bf16.mxu0 0
        %354 = vmatpush2.bf16.msra.mxu0 0
        %355 = vmatprep.subr.bf16.mxu0 0
        %356 = vmatpush2.bf16.msra.mxu0 0
        %357 = vmatprep.subr.bf16.mxu0 0
        %358 = vmatpush2.bf16.msra.mxu0 0
        %359 = vmatprep.mubr.bf16.mxu0 0
        %360 = vmatmul.mubr.bf16.gmra.mxu0 %v257
        %v361 = vpop.f32.mrf.mxu0
        %v362 = vadd.f32 %v278, %v361
        %v363 = vpop.f32.mrf.mxu0
        %v364 = vpop.f32.mrf.mxu0
        %v365 = vpop.f32.mrf.mxu0
        %366 = vdwg.mxu0
        %367 = vadd.xlane.f32.xlu0 %v362
        %v368 = vpop.xlane.xlu0 %367
        %v369 = vmul.f32 %v368, 0.03125
        %v370 = vmul.f32 %v362, %v362
        %371 = vadd.xlane.f32.xlu0 %v370
        %v372 = vpop.xlane.xlu0 %371
        %v373 = vmul.f32 %v372, 0.03125
        %v374 = vmul.f32 %v369, %v369
        %v375 = vsub.f32 %v373, %v374
        %v376 = vadd.f32 %v375, 1e-05
        %v377 = vrsqrt.pop %v376
        %v378 = vsub.f32 %v362, %v369
        %v379 = vmul.f32 %v378, %v377
        %v380 = vld [vmem:[#allocation7 + $0x1] sm:$0x1]
        %v381 = vlaneseq
        %v382 = vshrl.u32 %v381, 7
        %v383 = vsub.s32 0, %v382
        %v384 = vrot.slane %v380, %v383
        %v385 = vmul.f32 %v379, %v384
        %v386 = vld [vmem:[#allocation7 + $0x2] sm:$0x1]
        %v387 = vlaneseq
        %v388 = vshrl.u32 %v387, 7
        %v389 = vsub.s32 0, %v388
        %v390 = vrot.slane %v386, %v389
        %v391 = vadd.f32 %v385, %v390
        %v392 = vmul.f32 %v391, 0.5
        %v393 = vmul.f32 %v391, 0.70710677
        %v394 = verf.f32.pop %v393
        %v395 = vadd.f32 %v394, 1.0
        %v396 = vmul.f32 %v392, %v395
        %v397 = vpack.c.bf16 %v396, %v396
        %v398 = vld [vmem:[#allocation8] sm:$0xf]
        %v399 = vld [vmem:[#allocation8 + $0x4] sm:$0xf]
        %v400 = vld [vmem:[#allocation8 + $0x8] sm:$0xf]
        %v401 = vld [vmem:[#allocation8 + $0xc] sm:$0xf]
        %v402 = vld [vmem:[#allocation8 + $0x10] sm:$0xf]
        %v403 = vld [vmem:[#allocation8 + $0x14] sm:$0xf]
        %v404 = vld [vmem:[#allocation8 + $0x18] sm:$0xf]
        %v405 = vld [vmem:[#allocation8 + $0x1c] sm:$0xf]
        %v406 = vld [vmem:[#allocation8 + $0x20] sm:$0xf]
        %v407 = vld [vmem:[#allocation8 + $0x24] sm:$0xf]
        %v408 = vld [vmem:[#allocation8 + $0x28] sm:$0xf]
        %v409 = vld [vmem:[#allocation8 + $0x2c] sm:$0xf]
        %v410 = vld [vmem:[#allocation8 + $0x30] sm:$0xf]
        %v411 = vld [vmem:[#allocation8 + $0x34] sm:$0xf]
        %v412 = vld [vmem:[#allocation8 + $0x38] sm:$0xf]
        %v413 = vld [vmem:[#allocation8 + $0x3c] sm:$0xf]
        %v414 = vld [vmem:[#allocation7 + $0x3] sm:$0x1]
        %v415 = vlaneseq
        %v416 = vshrl.u32 %v415, 7
        %v417 = vsub.s32 0, %v416
        %v418 = vrot.slane %v414, %v417
        %v435 = vunpack.c.l.b16 %v398
        %v436 = vunpack.c.l.b16 %v399
        %v437 = vunpack.c.l.b16 %v400
        %v438 = vunpack.c.l.b16 %v401
        %v439 = vunpack.c.l.b16 %v402
        %v440 = vunpack.c.l.b16 %v403
        %v441 = vunpack.c.l.b16 %v404
        %v442 = vunpack.c.l.b16 %v405
        %v443 = vunpack.c.l.b16 %v406
        %v444 = vunpack.c.l.b16 %v407
        %v445 = vunpack.c.l.b16 %v408
        %v446 = vunpack.c.l.b16 %v409
        %v447 = vunpack.c.l.b16 %v410
        %v448 = vunpack.c.l.b16 %v411
        %v449 = vunpack.c.l.b16 %v412
        %v450 = vunpack.c.l.b16 %v413
        %v451 = vpack.c.b16 %v436, %v435
        %v452 = vpack.c.b16 %v438, %v437
        %v453 = vpack.c.b16 %v440, %v439
        %v454 = vpack.c.b16 %v442, %v441
        %v455 = vpack.c.b16 %v444, %v443
        %v456 = vpack.c.b16 %v446, %v445
        %v457 = vpack.c.b16 %v448, %v447
        %v458 = vpack.c.b16 %v450, %v449
        %467 = vmatprep.subr.bf16.mxu0 0
        %468 = vmatpush1.bf16.msra.mxu0 %v458
        %469 = vmatprep.subr.bf16.mxu0 0
        %470 = vmatpush1.bf16.msra.mxu0 %v457
        %471 = vmatprep.subr.bf16.mxu0 0
        %472 = vmatpush1.bf16.msra.mxu0 %v456
        %473 = vmatprep.subr.bf16.mxu0 0
        %474 = vmatpush1.bf16.msra.mxu0 %v455
        %475 = vmatprep.subr.bf16.mxu0 0
        %476 = vmatpush1.bf16.msra.mxu0 %v454
        %477 = vmatprep.subr.bf16.mxu0 0
        %478 = vmatpush1.bf16.msra.mxu0 %v453
        %479 = vmatprep.subr.bf16.mxu0 0
        %480 = vmatpush1.bf16.msra.mxu0 %v452
        %481 = vmatprep.subr.bf16.mxu0 0
        %482 = vmatpush1.bf16.msra.mxu0 %v451
        %483 = vmatprep.subr.bf16.mxu0 0
        %484 = vmatpush2.bf16.msra.mxu0 0
        %485 = vmatprep.subr.bf16.mxu0 0
        %486 = vmatpush2.bf16.msra.mxu0 0
        %487 = vmatprep.subr.bf16.mxu0 0
        %488 = vmatpush2.bf16.msra.mxu0 0
        %489 = vmatprep.subr.bf16.mxu0 0
        %490 = vmatpush2.bf16.msra.mxu0 0
        %491 = vmatprep.subr.bf16.mxu0 0
        %492 = vmatpush2.bf16.msra.mxu0 0
        %493 = vmatprep.subr.bf16.mxu0 0
        %494 = vmatpush2.bf16.msra.mxu0 0
        %495 = vmatprep.subr.bf16.mxu0 0
        %496 = vmatpush2.bf16.msra.mxu0 0
        %497 = vmatprep.subr.bf16.mxu0 0
        %498 = vmatpush2.bf16.msra.mxu0 0
        %499 = vmatprep.mubr.bf16.mxu0 0
        %500 = vmatmul.mubr.bf16.gmra.mxu0 %v397
        %v501 = vpop.f32.mrf.mxu0
        %v502 = vadd.f32 %v418, %v501
        %v503 = vpop.f32.mrf.mxu0
        %v504 = vpop.f32.mrf.mxu0
        %v505 = vpop.f32.mrf.mxu0
        %506 = vdwg.mxu0
        %507 = vst [vmem:[%s254] sm:$0xff] %v502
        %s508 = sand.u32 %s120, 1
        %s509 = scalar_lea.sflag [#allocation4], %s508
        %s510 = sand.u32 %s120, 1
        %s511 = smul.addr %s510, 8
        %s512 = scalar_lea.vmem [#allocation10], %s511
        // Predicated region
        $region53: #{tpu_custom_call.1} parent=35 // pred_check
          %p513 = pneg %p130
        $region54: #{tpu_custom_call.1} parent=35 // pred_check_branch
          %515 = sbr.rel (%p513) target = $region56
        $region55: #{tpu_custom_call.1} parent=35 // pred_region
          %s517 = ssub.s32 128, 128
          %518 = vsyncadd %s509, %s517
          %s519 = smul.addr %s23, 128
          %s520 = scalar_lea.hbm %s4, %s519
          %s522 = sshll.u32 %s512, 4
          %s523 = int_to_ptr.vmem [resolvable:$true] %s522
          %525 = dma.vmem_to_hbm [thread:$0]  %s523, 128, %s520, %s509
        $region56: #{tpu_custom_call.1} parent=35 // pred_fallthru
          _
      $region36: #{tpu_custom_call.1} parent=5 // pred_fallthru
        _
      %p526 = scmp.le.s32.totalorder 2, %s18
      // Predicated region
      $region57: #{tpu_custom_call.1} parent=5 // pred_check
        %p527 = pneg %p526
      $region58: #{tpu_custom_call.1} parent=5 // pred_check_branch
        %529 = sbr.rel (%p527) target = $region60
      $region59: #{tpu_custom_call.1} parent=5 // pred_region
        %s530 = ssub.s32 %s18, 2
        // Predicated region
        $region61: #{tpu_custom_call.1} parent=59 // pred_check
          %p531 = pneg %p136
        $region62: #{tpu_custom_call.1} parent=59 // pred_check_branch
          %533 = sbr.rel (%p531) target = $region64
        $region63: #{tpu_custom_call.1} parent=59 // pred_region
          %s534 = sand.u32 %s121, 1
          %s535 = scalar_lea.sflag [#allocation4], %s534
          %s536 = sand.u32 %s121, 1
          %s537 = smul.addr %s536, 8
          %s538 = scalar_lea.vmem [#allocation10], %s537
          %539 = dma.done %s535, 128
        $region64: #{tpu_custom_call.1} parent=59 // pred_fallthru
          _
      $region60: #{tpu_custom_call.1} parent=5 // pred_fallthru
        _
    $region6: #{tpu_custom_call.1} parent=1 // loop_footer
      %s22 = sadd.s32 1, %s18
    $region7: #{tpu_custom_call.1} parent=1 // loop_footer_branch
      %17 = sbr.rel target = $region3
    $region8: #{tpu_custom_call.1} parent=1 // loop_exit
      _
    %540 = vsyncpa [#allocation3], 1
    %s541 = scalar_lea.sflag [#allocation3], 1
    %542 = vsyncpa %s541, 1
    %543 = vsyncpa [#allocation6], 1
    %544 = vsyncpa [#allocation9], 1
    %545 = vsyncpa [#allocation4], 1
    %s546 = scalar_lea.sflag [#allocation4], 1
    %547 = vsyncpa %s546, 1

</llo_original>
